<compile_context>
chip_gen: v6e
topology: v6e:2x2x1
jax: 0.10.0
libtpu: 0.0.40
codegen_flags: <defaults>
</compile_context>

<pallas_src>
import math
import numpy as np
import jax
import jax.numpy as jnp
from jax import lax
from jax.experimental import pallas as pl
from jax.experimental.pallas import tpu as pltpu


def _pick_tile(n, target, align):
    """Use the full dim if it is small, otherwise a hardware-aligned tile <= target."""
    if n <= target:
        return n
    return max((target // align) * align, align)


def t5_relative_attention_bias(
    emb,                       # (num_buckets, E) embedding table, E = n_head * layers_or_1
    q_len,
    k_len=None,
    *,
    bidirectional,
    cached_autoregressive=False,
    num_buckets=32,
    max_distance=128,
    n_head,
    num_layers=1,
    pos_emb_per_layer=False,
):
    if k_len is None:
        k_len = q_len
    E = emb.shape[1]
    assert emb.shape[0] == num_buckets
    assert E == n_head * (num_layers if pos_emb_per_layer else 1)

    # With cached_autoregressive the PyTorch code produces a single query row
    # (context position fixed at q_len - 1).
    rows = 1 if cached_autoregressive else q_len
    excess = k_len - rows
    nb = num_buckets // 2 if bidirectional else num_buckets
    max_exact = nb // 2
    inv_log_ratio = 1.0 / math.log(max_distance / max_exact)

    # ---- tile sizes: k tiles are multiples of 128 (lane-dense stores), q tiles
    # multiples of 8.  Budget ~4 MiB per output block so that the double-buffered
    # block plus in-kernel temporaries stays well inside scoped VMEM on every
    # generation (v5e 16 MiB default, v7x 64 MiB physical).
    elem_budget = max((4 << 20) // (4 * E), 8 * 128)
    tk_target = min(2048, max(128, (elem_budget // (8 * 128)) * 128))
    tk = _pick_tile(k_len, tk_target, 128)
    tq_target = min(256, max(8, (elem_budget // max(tk, 1)) // 8 * 8))
    tq = _pick_tile(rows, tq_target, 8)
    grid = (pl.cdiv(rows, tq), pl.cdiv(k_len, tk))

    def kernel(emb_ref, out_ref):
        # emb_ref: (num_buckets, E) in SMEM (scalar reads)
        # out_ref: (E, tq, tk) VMEM block of the (E, rows, k_len) output
        q0 = pl.program_id(0) * tq
        k0 = pl.program_id(1) * tk
        row = q0 + lax.broadcasted_iota(jnp.int32, (tq, tk), 0)
        col = k0 + lax.broadcasted_iota(jnp.int32, (tq, tk), 1)

        if cached_autoregressive:
            rp = col - (q_len - 1)          # memory_position - (fixed) context_position
        else:
            rp = col - row                  # context_position == row

        if bidirectional:
            # torch.triu(full(nb), diagonal=1+excess)
            rel = jnp.where(col - row >= 1 + excess, nb, 0).astype(jnp.int32)
            rp_p = jnp.abs(rp)
        else:
            # -torch.tril(rp, diagonal=excess)
            rel = None
            rp_p = jnp.where(col - row <= excess, -rp, 0)

        is_small = rp_p < max_exact
        # clamp to >=1 only to keep log() finite; clamped entries always take
        # the "small" branch so semantics are unchanged.
        rp_f = jnp.maximum(rp_p, 1).astype(jnp.float32)
        if_large = max_exact + (
            jnp.log(rp_f / max_exact) * inv_log_ratio * (nb - max_exact)
        ).astype(jnp.int32)                 # trunc-toward-zero == .long() for >=0
        if_large = jnp.minimum(if_large, nb - 1)
        buckets = jnp.where(is_small, rp_p, if_large)
        if rel is not None:
            buckets = buckets + rel         # (tq, tk) int32

        # Embedding lookup as a VPU select-accumulate (no MXU, no one-hot).
        # NOTE: a negative bucket (possible only in regions a causal mask would
        # hide, e.g. pathological cached/excess configs) matches no b and keeps
        # the zero init — same silent-zero behaviour as the previous kernel.
        planes = [jnp.zeros((tq, tk), jnp.float32) for _ in range(E)]
        for b in range(num_buckets):
            cmp = buckets == b              # shared across the E planes
            for e in range(E):
                planes[e] = jnp.where(cmp, emb_ref[b, e], planes[e])
        for e in range(E):
            out_ref[e] = planes[e].astype(out_ref.dtype)

    vals = pl.pallas_call(
        kernel,
        out_shape=jax.ShapeDtypeStruct((E, rows, k_len), emb.dtype),
        grid=grid,
        in_specs=[pl.BlockSpec(memory_space=pltpu.MemorySpace.SMEM)],
        out_specs=pl.BlockSpec((E, tq, tk), lambda i, j: (0, i, j)),
        compiler_params=pltpu.CompilerParams(
            dimension_semantics=("parallel", "parallel"),
            vmem_limit_bytes=32 * 1024 * 1024,
        ),
    )(emb.astype(jnp.float32))

    # Glue: pure reshapes, no transposes (the kernel already leads with E).
    if pos_emb_per_layer:
        # (layers*heads, q, k) -> (layers, 1, heads, q, k)
        out = vals.reshape(num_layers, n_head, rows, k_len)[:, None]
    else:
        # (heads, q, k) -> (1, heads, q, k)
        out = vals[None]
    return out


# ---------------- pure NumPy reference (mirrors the PyTorch code) -------------
def _ref_values(emb, q_len, k_len, bidirectional, cached_autoregressive,
                num_buckets=32, max_distance=128):
    if k_len is None:
        k_len = q_len
    mem = np.arange(k_len)[None, :]
    ctx = (q_len - 1) if cached_autoregressive else np.arange(q_len)[:, None]
    rp = mem - ctx
    rows, kk = rp.shape
    excess = kk - rows
    nb = num_buckets
    if bidirectional:
        nb //= 2
        rel_buckets = np.triu(np.full_like(rp, nb), k=1 + excess)
        rp = np.abs(rp)
    else:
        rel_buckets = np.zeros_like(rp)
        rp = -np.tril(rp, k=excess)
    max_exact = nb // 2
    is_small = rp < max_exact
    rp_safe = np.maximum(rp, 1).astype(np.float32)
    inv_log_ratio = 1.0 / math.log(max_distance / max_exact)
    if_large = max_exact + (
        np.log(rp_safe / max_exact) * inv_log_ratio * (nb - max_exact)
    ).astype(np.int64)
    if_large = np.minimum(if_large, nb - 1)
    buckets = rel_buckets + np.where(is_small, rp, if_large)
    return np.asarray(emb)[buckets]  # (rows, kk, E)


if __name__ == "__main__":
    key = jax.random.PRNGKey(0)
    num_buckets, max_distance = 32, 128
    n_head, num_layers = 4, 2
    q_len, k_len = 8, 8

    # --- T5-style: one shared position embedding (pos_emb_per_layer=False) ---
    emb = jax.random.normal(key, (num_buckets, n_head), dtype=jnp.float32)

    for bidir, cached in [(True, False), (False, False), (False, True)]:
        out = t5_relative_attention_bias(
            emb, q_len, k_len,
            bidirectional=bidir, cached_autoregressive=cached,
            num_buckets=num_buckets, max_distance=max_distance, n_head=n_head,
        )
        out = jax.block_until_ready(out)
        ref = _ref_values(np.asarray(emb), q_len, k_len, bidir, cached,
                          num_buckets, max_distance)
        ref = ref.transpose(2, 0, 1)[None]  # 'q k h -> 1 h q k'
        assert out.shape == ref.shape, (out.shape, ref.shape)
        np.testing.assert_allclose(np.asarray(out), ref, rtol=1e-6, atol=1e-6)

    # --- UMT5-style: per-layer position embedding (pos_emb_per_layer=True) ---
    emb_pl = jax.random.normal(jax.random.PRNGKey(1),
                               (num_buckets, n_head * num_layers), dtype=jnp.float32)
    out = t5_relative_attention_bias(
        emb_pl, q_len, k_len,
        bidirectional=True, num_buckets=num_buckets, max_distance=max_distance,
        n_head=n_head, num_layers=num_layers, pos_emb_per_layer=True,
    )
    out = jax.block_until_ready(out)
    ref = _ref_values(np.asarray(emb_pl), q_len, k_len, True, False,
                      num_buckets, max_distance)
    ref = ref.reshape(q_len, k_len, num_layers, n_head).transpose(2, 3, 0, 1)[:, None]
    assert out.shape == ref.shape
    np.testing.assert_allclose(np.asarray(out), ref, rtol=1e-6, atol=1e-6)

    print("KERNEL_OK")
</pallas_src>

<mosaic_0001>
module attributes {stable_mosaic.version = 11 : i64} {
  func.func @kernel(%arg0: i32, %arg1: i32, %arg2: memref<32x4xf32, #tpu.memory_space<smem>>, %arg3: memref<4x8x8xf32, #tpu.memory_space<vmem>>) attributes {dimension_semantics = [#tpu.dimension_semantics<parallel>, #tpu.dimension_semantics<parallel>], iteration_bounds = array<i64: 1, 1>, scalar_prefetch = 0 : i64, scratch_operands = 0 : i64, tpu.core_type = #tpu.core_type<tc>, window_params = [{transform_indices = @transform_0, window_bounds = array<i64: 32, 4>}, {transform_indices = @transform_1, window_bounds = array<i64: 4, 8, 8>}]} {
    %c8_i32 = arith.constant 8 : i32
    %0 = arith.muli %arg0, %c8_i32 : i32
    %c8_i32_0 = arith.constant 8 : i32
    %1 = arith.muli %arg1, %c8_i32_0 : i32
    %2 = tpu.iota {dimensions = array<i32: 0>} : vector<8x8xi32>
    %3 = vector.broadcast %0 : i32 to vector<8x8xi32>
    %4 = arith.addi %3, %2 : vector<8x8xi32>
    %5 = tpu.iota {dimensions = array<i32: 1>} : vector<8x8xi32>
    %6 = vector.broadcast %1 : i32 to vector<8x8xi32>
    %7 = arith.addi %6, %5 : vector<8x8xi32>
    %8 = arith.subi %7, %4 : vector<8x8xi32>
    %9 = arith.subi %7, %4 : vector<8x8xi32>
    %c1_i32 = arith.constant 1 : i32
    %10 = vector.broadcast %c1_i32 : i32 to vector<8x8xi32>
    %11 = arith.cmpi sge, %9, %10 : vector<8x8xi32>
    %c16_i32 = arith.constant 16 : i32
    %c0_i32 = arith.constant 0 : i32
    %12 = vector.broadcast %c16_i32 : i32 to vector<8x8xi32>
    %13 = vector.broadcast %c0_i32 : i32 to vector<8x8xi32>
    %14 = arith.select %11, %12, %13 : vector<8x8xi1>, vector<8x8xi32>
    %15 = math.absi %8 : vector<8x8xi32>
    %c8_i32_1 = arith.constant 8 : i32
    %16 = vector.broadcast %c8_i32_1 : i32 to vector<8x8xi32>
    %17 = arith.cmpi slt, %15, %16 : vector<8x8xi32>
    %c1_i32_2 = arith.constant 1 : i32
    %18 = vector.broadcast %c1_i32_2 : i32 to vector<8x8xi32>
    %19 = arith.maxsi %15, %18 : vector<8x8xi32>
    %20 = arith.sitofp %19 : vector<8x8xi32> to vector<8x8xf32>
    %cst = arith.constant 8.000000e+00 : f32
    %21 = vector.broadcast %cst : f32 to vector<8x8xf32>
    %22 = arith.divf %20, %21 : vector<8x8xf32>
    %23 = math.log %22 : vector<8x8xf32>
    %cst_3 = arith.constant 0.360673755 : f32
    %24 = vector.broadcast %cst_3 : f32 to vector<8x8xf32>
    %25 = arith.mulf %23, %24 : vector<8x8xf32>
    %cst_4 = arith.constant 8.000000e+00 : f32
    %26 = vector.broadcast %cst_4 : f32 to vector<8x8xf32>
    %27 = arith.mulf %25, %26 : vector<8x8xf32>
    %28 = arith.fptosi %27 : vector<8x8xf32> to vector<8x8xi32>
    %c8_i32_5 = arith.constant 8 : i32
    %29 = vector.broadcast %c8_i32_5 : i32 to vector<8x8xi32>
    %30 = arith.addi %29, %28 : vector<8x8xi32>
    %c15_i32 = arith.constant 15 : i32
    %31 = vector.broadcast %c15_i32 : i32 to vector<8x8xi32>
    %32 = arith.minsi %30, %31 : vector<8x8xi32>
    %33 = arith.select %17, %15, %32 : vector<8x8xi1>, vector<8x8xi32>
    %34 = arith.addi %33, %14 : vector<8x8xi32>
    %cst_6 = arith.constant 0.000000e+00 : f32
    %35 = vector.broadcast %cst_6 : f32 to vector<8x8xf32>
    %cst_7 = arith.constant 0.000000e+00 : f32
    %36 = vector.broadcast %cst_7 : f32 to vector<8x8xf32>
    %cst_8 = arith.constant 0.000000e+00 : f32
    %37 = vector.broadcast %cst_8 : f32 to vector<8x8xf32>
    %cst_9 = arith.constant 0.000000e+00 : f32
    %38 = vector.broadcast %cst_9 : f32 to vector<8x8xf32>
    %c0_i32_10 = arith.constant 0 : i32
    %39 = vector.broadcast %c0_i32_10 : i32 to vector<8x8xi32>
    %40 = arith.cmpi eq, %34, %39 : vector<8x8xi32>
    %c0 = arith.constant 0 : index
    %c0_11 = arith.constant 0 : index
    %41 = memref.load %arg2[%c0, %c0_11] : memref<32x4xf32, #tpu.memory_space<smem>>
    %42 = vector.broadcast %41 : f32 to vector<8x8xf32>
    %43 = arith.select %40, %42, %35 : vector<8x8xi1>, vector<8x8xf32>
    %c0_12 = arith.constant 0 : index
    %c1 = arith.constant 1 : index
    %44 = memref.load %arg2[%c0_12, %c1] : memref<32x4xf32, #tpu.memory_space<smem>>
    %45 = vector.broadcast %44 : f32 to vector<8x8xf32>
    %46 = arith.select %40, %45, %36 : vector<8x8xi1>, vector<8x8xf32>
    %c0_13 = arith.constant 0 : index
    %c2 = arith.constant 2 : index
    %47 = memref.load %arg2[%c0_13, %c2] : memref<32x4xf32, #tpu.memory_space<smem>>
    %48 = vector.broadcast %47 : f32 to vector<8x8xf32>
    %49 = arith.select %40, %48, %37 : vector<8x8xi1>, vector<8x8xf32>
    %c0_14 = arith.constant 0 : index
    %c3 = arith.constant 3 : index
    %50 = memref.load %arg2[%c0_14, %c3] : memref<32x4xf32, #tpu.memory_space<smem>>
    %51 = vector.broadcast %50 : f32 to vector<8x8xf32>
    %52 = arith.select %40, %51, %38 : vector<8x8xi1>, vector<8x8xf32>
    %c1_i32_15 = arith.constant 1 : i32
    %53 = vector.broadcast %c1_i32_15 : i32 to vector<8x8xi32>
    %54 = arith.cmpi eq, %34, %53 : vector<8x8xi32>
    %c1_16 = arith.constant 1 : index
    %c0_17 = arith.constant 0 : index
    %55 = memref.load %arg2[%c1_16, %c0_17] : memref<32x4xf32, #tpu.memory_space<smem>>
    %56 = vector.broadcast %55 : f32 to vector<8x8xf32>
    %57 = arith.select %54, %56, %43 : vector<8x8xi1>, vector<8x8xf32>
    %c1_18 = arith.constant 1 : index
    %c1_19 = arith.constant 1 : index
    %58 = memref.load %arg2[%c1_18, %c1_19] : memref<32x4xf32, #tpu.memory_space<smem>>
    %59 = vector.broadcast %58 : f32 to vector<8x8xf32>
    %60 = arith.select %54, %59, %46 : vector<8x8xi1>, vector<8x8xf32>
    %c1_20 = arith.constant 1 : index
    %c2_21 = arith.constant 2 : index
    %61 = memref.load %arg2[%c1_20, %c2_21] : memref<32x4xf32, #tpu.memory_space<smem>>
    %62 = vector.broadcast %61 : f32 to vector<8x8xf32>
    %63 = arith.select %54, %62, %49 : vector<8x8xi1>, vector<8x8xf32>
    %c1_22 = arith.constant 1 : index
    %c3_23 = arith.constant 3 : index
    %64 = memref.load %arg2[%c1_22, %c3_23] : memref<32x4xf32, #tpu.memory_space<smem>>
    %65 = vector.broadcast %64 : f32 to vector<8x8xf32>
    %66 = arith.select %54, %65, %52 : vector<8x8xi1>, vector<8x8xf32>
    %c2_i32 = arith.constant 2 : i32
    %67 = vector.broadcast %c2_i32 : i32 to vector<8x8xi32>
    %68 = arith.cmpi eq, %34, %67 : vector<8x8xi32>
    %c2_24 = arith.constant 2 : index
    %c0_25 = arith.constant 0 : index
    %69 = memref.load %arg2[%c2_24, %c0_25] : memref<32x4xf32, #tpu.memory_space<smem>>
    %70 = vector.broadcast %69 : f32 to vector<8x8xf32>
    %71 = arith.select %68, %70, %57 : vector<8x8xi1>, vector<8x8xf32>
    %c2_26 = arith.constant 2 : index
    %c1_27 = arith.constant 1 : index
    %72 = memref.load %arg2[%c2_26, %c1_27] : memref<32x4xf32, #tpu.memory_space<smem>>
    %73 = vector.broadcast %72 : f32 to vector<8x8xf32>
    %74 = arith.select %68, %73, %60 : vector<8x8xi1>, vector<8x8xf32>
    %c2_28 = arith.constant 2 : index
    %c2_29 = arith.constant 2 : index
    %75 = memref.load %arg2[%c2_28, %c2_29] : memref<32x4xf32, #tpu.memory_space<smem>>
    %76 = vector.broadcast %75 : f32 to vector<8x8xf32>
    %77 = arith.select %68, %76, %63 : vector<8x8xi1>, vector<8x8xf32>
    %c2_30 = arith.constant 2 : index
    %c3_31 = arith.constant 3 : index
    %78 = memref.load %arg2[%c2_30, %c3_31] : memref<32x4xf32, #tpu.memory_space<smem>>
    %79 = vector.broadcast %78 : f32 to vector<8x8xf32>
    %80 = arith.select %68, %79, %66 : vector<8x8xi1>, vector<8x8xf32>
    %c3_i32 = arith.constant 3 : i32
    %81 = vector.broadcast %c3_i32 : i32 to vector<8x8xi32>
    %82 = arith.cmpi eq, %34, %81 : vector<8x8xi32>
    %c3_32 = arith.constant 3 : index
    %c0_33 = arith.constant 0 : index
    %83 = memref.load %arg2[%c3_32, %c0_33] : memref<32x4xf32, #tpu.memory_space<smem>>
    %84 = vector.broadcast %83 : f32 to vector<8x8xf32>
    %85 = arith.select %82, %84, %71 : vector<8x8xi1>, vector<8x8xf32>
    %c3_34 = arith.constant 3 : index
    %c1_35 = arith.constant 1 : index
    %86 = memref.load %arg2[%c3_34, %c1_35] : memref<32x4xf32, #tpu.memory_space<smem>>
    %87 = vector.broadcast %86 : f32 to vector<8x8xf32>
    %88 = arith.select %82, %87, %74 : vector<8x8xi1>, vector<8x8xf32>
    %c3_36 = arith.constant 3 : index
    %c2_37 = arith.constant 2 : index
    %89 = memref.load %arg2[%c3_36, %c2_37] : memref<32x4xf32, #tpu.memory_space<smem>>
    %90 = vector.broadcast %89 : f32 to vector<8x8xf32>
    %91 = arith.select %82, %90, %77 : vector<8x8xi1>, vector<8x8xf32>
    %c3_38 = arith.constant 3 : index
    %c3_39 = arith.constant 3 : index
    %92 = memref.load %arg2[%c3_38, %c3_39] : memref<32x4xf32, #tpu.memory_space<smem>>
    %93 = vector.broadcast %92 : f32 to vector<8x8xf32>
    %94 = arith.select %82, %93, %80 : vector<8x8xi1>, vector<8x8xf32>
    %c4_i32 = arith.constant 4 : i32
    %95 = vector.broadcast %c4_i32 : i32 to vector<8x8xi32>
    %96 = arith.cmpi eq, %34, %95 : vector<8x8xi32>
    %c4 = arith.constant 4 : index
    %c0_40 = arith.constant 0 : index
    %97 = memref.load %arg2[%c4, %c0_40] : memref<32x4xf32, #tpu.memory_space<smem>>
    %98 = vector.broadcast %97 : f32 to vector<8x8xf32>
    %99 = arith.select %96, %98, %85 : vector<8x8xi1>, vector<8x8xf32>
    %c4_41 = arith.constant 4 : index
    %c1_42 = arith.constant 1 : index
    %100 = memref.load %arg2[%c4_41, %c1_42] : memref<32x4xf32, #tpu.memory_space<smem>>
    %101 = vector.broadcast %100 : f32 to vector<8x8xf32>
    %102 = arith.select %96, %101, %88 : vector<8x8xi1>, vector<8x8xf32>
    %c4_43 = arith.constant 4 : index
    %c2_44 = arith.constant 2 : index
    %103 = memref.load %arg2[%c4_43, %c2_44] : memref<32x4xf32, #tpu.memory_space<smem>>
    %104 = vector.broadcast %103 : f32 to vector<8x8xf32>
    %105 = arith.select %96, %104, %91 : vector<8x8xi1>, vector<8x8xf32>
    %c4_45 = arith.constant 4 : index
    %c3_46 = arith.constant 3 : index
    %106 = memref.load %arg2[%c4_45, %c3_46] : memref<32x4xf32, #tpu.memory_space<smem>>
    %107 = vector.broadcast %106 : f32 to vector<8x8xf32>
    %108 = arith.select %96, %107, %94 : vector<8x8xi1>, vector<8x8xf32>
    %c5_i32 = arith.constant 5 : i32
    %109 = vector.broadcast %c5_i32 : i32 to vector<8x8xi32>
    %110 = arith.cmpi eq, %34, %109 : vector<8x8xi32>
    %c5 = arith.constant 5 : index
    %c0_47 = arith.constant 0 : index
    %111 = memref.load %arg2[%c5, %c0_47] : memref<32x4xf32, #tpu.memory_space<smem>>
    %112 = vector.broadcast %111 : f32 to vector<8x8xf32>
    %113 = arith.select %110, %112, %99 : vector<8x8xi1>, vector<8x8xf32>
    %c5_48 = arith.constant 5 : index
    %c1_49 = arith.constant 1 : index
    %114 = memref.load %arg2[%c5_48, %c1_49] : memref<32x4xf32, #tpu.memory_space<smem>>
    %115 = vector.broadcast %114 : f32 to vector<8x8xf32>
    %116 = arith.select %110, %115, %102 : vector<8x8xi1>, vector<8x8xf32>
    %c5_50 = arith.constant 5 : index
    %c2_51 = arith.constant 2 : index
    %117 = memref.load %arg2[%c5_50, %c2_51] : memref<32x4xf32, #tpu.memory_space<smem>>
    %118 = vector.broadcast %117 : f32 to vector<8x8xf32>
    %119 = arith.select %110, %118, %105 : vector<8x8xi1>, vector<8x8xf32>
    %c5_52 = arith.constant 5 : index
    %c3_53 = arith.constant 3 : index
    %120 = memref.load %arg2[%c5_52, %c3_53] : memref<32x4xf32, #tpu.memory_space<smem>>
    %121 = vector.broadcast %120 : f32 to vector<8x8xf32>
    %122 = arith.select %110, %121, %108 : vector<8x8xi1>, vector<8x8xf32>
    %c6_i32 = arith.constant 6 : i32
    %123 = vector.broadcast %c6_i32 : i32 to vector<8x8xi32>
    %124 = arith.cmpi eq, %34, %123 : vector<8x8xi32>
    %c6 = arith.constant 6 : index
    %c0_54 = arith.constant 0 : index
    %125 = memref.load %arg2[%c6, %c0_54] : memref<32x4xf32, #tpu.memory_space<smem>>
    %126 = vector.broadcast %125 : f32 to vector<8x8xf32>
    %127 = arith.select %124, %126, %113 : vector<8x8xi1>, vector<8x8xf32>
    %c6_55 = arith.constant 6 : index
    %c1_56 = arith.constant 1 : index
    %128 = memref.load %arg2[%c6_55, %c1_56] : memref<32x4xf32, #tpu.memory_space<smem>>
    %129 = vector.broadcast %128 : f32 to vector<8x8xf32>
    %130 = arith.select %124, %129, %116 : vector<8x8xi1>, vector<8x8xf32>
    %c6_57 = arith.constant 6 : index
    %c2_58 = arith.constant 2 : index
    %131 = memref.load %arg2[%c6_57, %c2_58] : memref<32x4xf32, #tpu.memory_space<smem>>
    %132 = vector.broadcast %131 : f32 to vector<8x8xf32>
    %133 = arith.select %124, %132, %119 : vector<8x8xi1>, vector<8x8xf32>
    %c6_59 = arith.constant 6 : index
    %c3_60 = arith.constant 3 : index
    %134 = memref.load %arg2[%c6_59, %c3_60] : memref<32x4xf32, #tpu.memory_space<smem>>
    %135 = vector.broadcast %134 : f32 to vector<8x8xf32>
    %136 = arith.select %124, %135, %122 : vector<8x8xi1>, vector<8x8xf32>
    %c7_i32 = arith.constant 7 : i32
    %137 = vector.broadcast %c7_i32 : i32 to vector<8x8xi32>
    %138 = arith.cmpi eq, %34, %137 : vector<8x8xi32>
    %c7 = arith.constant 7 : index
    %c0_61 = arith.constant 0 : index
    %139 = memref.load %arg2[%c7, %c0_61] : memref<32x4xf32, #tpu.memory_space<smem>>
    %140 = vector.broadcast %139 : f32 to vector<8x8xf32>
    %141 = arith.select %138, %140, %127 : vector<8x8xi1>, vector<8x8xf32>
    %c7_62 = arith.constant 7 : index
    %c1_63 = arith.constant 1 : index
    %142 = memref.load %arg2[%c7_62, %c1_63] : memref<32x4xf32, #tpu.memory_space<smem>>
    %143 = vector.broadcast %142 : f32 to vector<8x8xf32>
    %144 = arith.select %138, %143, %130 : vector<8x8xi1>, vector<8x8xf32>
    %c7_64 = arith.constant 7 : index
    %c2_65 = arith.constant 2 : index
    %145 = memref.load %arg2[%c7_64, %c2_65] : memref<32x4xf32, #tpu.memory_space<smem>>
    %146 = vector.broadcast %145 : f32 to vector<8x8xf32>
    %147 = arith.select %138, %146, %133 : vector<8x8xi1>, vector<8x8xf32>
    %c7_66 = arith.constant 7 : index
    %c3_67 = arith.constant 3 : index
    %148 = memref.load %arg2[%c7_66, %c3_67] : memref<32x4xf32, #tpu.memory_space<smem>>
    %149 = vector.broadcast %148 : f32 to vector<8x8xf32>
    %150 = arith.select %138, %149, %136 : vector<8x8xi1>, vector<8x8xf32>
    %c8_i32_68 = arith.constant 8 : i32
    %151 = vector.broadcast %c8_i32_68 : i32 to vector<8x8xi32>
    %152 = arith.cmpi eq, %34, %151 : vector<8x8xi32>
    %c8 = arith.constant 8 : index
    %c0_69 = arith.constant 0 : index
    %153 = memref.load %arg2[%c8, %c0_69] : memref<32x4xf32, #tpu.memory_space<smem>>
    %154 = vector.broadcast %153 : f32 to vector<8x8xf32>
    %155 = arith.select %152, %154, %141 : vector<8x8xi1>, vector<8x8xf32>
    %c8_70 = arith.constant 8 : index
    %c1_71 = arith.constant 1 : index
    %156 = memref.load %arg2[%c8_70, %c1_71] : memref<32x4xf32, #tpu.memory_space<smem>>
    %157 = vector.broadcast %156 : f32 to vector<8x8xf32>
    %158 = arith.select %152, %157, %144 : vector<8x8xi1>, vector<8x8xf32>
    %c8_72 = arith.constant 8 : index
    %c2_73 = arith.constant 2 : index
    %159 = memref.load %arg2[%c8_72, %c2_73] : memref<32x4xf32, #tpu.memory_space<smem>>
    %160 = vector.broadcast %159 : f32 to vector<8x8xf32>
    %161 = arith.select %152, %160, %147 : vector<8x8xi1>, vector<8x8xf32>
    %c8_74 = arith.constant 8 : index
    %c3_75 = arith.constant 3 : index
    %162 = memref.load %arg2[%c8_74, %c3_75] : memref<32x4xf32, #tpu.memory_space<smem>>
    %163 = vector.broadcast %162 : f32 to vector<8x8xf32>
    %164 = arith.select %152, %163, %150 : vector<8x8xi1>, vector<8x8xf32>
    %c9_i32 = arith.constant 9 : i32
    %165 = vector.broadcast %c9_i32 : i32 to vector<8x8xi32>
    %166 = arith.cmpi eq, %34, %165 : vector<8x8xi32>
    %c9 = arith.constant 9 : index
    %c0_76 = arith.constant 0 : index
    %167 = memref.load %arg2[%c9, %c0_76] : memref<32x4xf32, #tpu.memory_space<smem>>
    %168 = vector.broadcast %167 : f32 to vector<8x8xf32>
    %169 = arith.select %166, %168, %155 : vector<8x8xi1>, vector<8x8xf32>
    %c9_77 = arith.constant 9 : index
    %c1_78 = arith.constant 1 : index
    %170 = memref.load %arg2[%c9_77, %c1_78] : memref<32x4xf32, #tpu.memory_space<smem>>
    %171 = vector.broadcast %170 : f32 to vector<8x8xf32>
    %172 = arith.select %166, %171, %158 : vector<8x8xi1>, vector<8x8xf32>
    %c9_79 = arith.constant 9 : index
    %c2_80 = arith.constant 2 : index
    %173 = memref.load %arg2[%c9_79, %c2_80] : memref<32x4xf32, #tpu.memory_space<smem>>
    %174 = vector.broadcast %173 : f32 to vector<8x8xf32>
    %175 = arith.select %166, %174, %161 : vector<8x8xi1>, vector<8x8xf32>
    %c9_81 = arith.constant 9 : index
    %c3_82 = arith.constant 3 : index
    %176 = memref.load %arg2[%c9_81, %c3_82] : memref<32x4xf32, #tpu.memory_space<smem>>
    %177 = vector.broadcast %176 : f32 to vector<8x8xf32>
    %178 = arith.select %166, %177, %164 : vector<8x8xi1>, vector<8x8xf32>
    %c10_i32 = arith.constant 10 : i32
    %179 = vector.broadcast %c10_i32 : i32 to vector<8x8xi32>
    %180 = arith.cmpi eq, %34, %179 : vector<8x8xi32>
    %c10 = arith.constant 10 : index
    %c0_83 = arith.constant 0 : index
    %181 = memref.load %arg2[%c10, %c0_83] : memref<32x4xf32, #tpu.memory_space<smem>>
    %182 = vector.broadcast %181 : f32 to vector<8x8xf32>
    %183 = arith.select %180, %182, %169 : vector<8x8xi1>, vector<8x8xf32>
    %c10_84 = arith.constant 10 : index
    %c1_85 = arith.constant 1 : index
    %184 = memref.load %arg2[%c10_84, %c1_85] : memref<32x4xf32, #tpu.memory_space<smem>>
    %185 = vector.broadcast %184 : f32 to vector<8x8xf32>
    %186 = arith.select %180, %185, %172 : vector<8x8xi1>, vector<8x8xf32>
    %c10_86 = arith.constant 10 : index
    %c2_87 = arith.constant 2 : index
    %187 = memref.load %arg2[%c10_86, %c2_87] : memref<32x4xf32, #tpu.memory_space<smem>>
    %188 = vector.broadcast %187 : f32 to vector<8x8xf32>
    %189 = arith.select %180, %188, %175 : vector<8x8xi1>, vector<8x8xf32>
    %c10_88 = arith.constant 10 : index
    %c3_89 = arith.constant 3 : index
    %190 = memref.load %arg2[%c10_88, %c3_89] : memref<32x4xf32, #tpu.memory_space<smem>>
    %191 = vector.broadcast %190 : f32 to vector<8x8xf32>
    %192 = arith.select %180, %191, %178 : vector<8x8xi1>, vector<8x8xf32>
    %c11_i32 = arith.constant 11 : i32
    %193 = vector.broadcast %c11_i32 : i32 to vector<8x8xi32>
    %194 = arith.cmpi eq, %34, %193 : vector<8x8xi32>
    %c11 = arith.constant 11 : index
    %c0_90 = arith.constant 0 : index
    %195 = memref.load %arg2[%c11, %c0_90] : memref<32x4xf32, #tpu.memory_space<smem>>
    %196 = vector.broadcast %195 : f32 to vector<8x8xf32>
    %197 = arith.select %194, %196, %183 : vector<8x8xi1>, vector<8x8xf32>
    %c11_91 = arith.constant 11 : index
    %c1_92 = arith.constant 1 : index
    %198 = memref.load %arg2[%c11_91, %c1_92] : memref<32x4xf32, #tpu.memory_space<smem>>
    %199 = vector.broadcast %198 : f32 to vector<8x8xf32>
    %200 = arith.select %194, %199, %186 : vector<8x8xi1>, vector<8x8xf32>
    %c11_93 = arith.constant 11 : index
    %c2_94 = arith.constant 2 : index
    %201 = memref.load %arg2[%c11_93, %c2_94] : memref<32x4xf32, #tpu.memory_space<smem>>
    %202 = vector.broadcast %201 : f32 to vector<8x8xf32>
    %203 = arith.select %194, %202, %189 : vector<8x8xi1>, vector<8x8xf32>
    %c11_95 = arith.constant 11 : index
    %c3_96 = arith.constant 3 : index
    %204 = memref.load %arg2[%c11_95, %c3_96] : memref<32x4xf32, #tpu.memory_space<smem>>
    %205 = vector.broadcast %204 : f32 to vector<8x8xf32>
    %206 = arith.select %194, %205, %192 : vector<8x8xi1>, vector<8x8xf32>
    %c12_i32 = arith.constant 12 : i32
    %207 = vector.broadcast %c12_i32 : i32 to vector<8x8xi32>
    %208 = arith.cmpi eq, %34, %207 : vector<8x8xi32>
    %c12 = arith.constant 12 : index
    %c0_97 = arith.constant 0 : index
    %209 = memref.load %arg2[%c12, %c0_97] : memref<32x4xf32, #tpu.memory_space<smem>>
    %210 = vector.broadcast %209 : f32 to vector<8x8xf32>
    %211 = arith.select %208, %210, %197 : vector<8x8xi1>, vector<8x8xf32>
    %c12_98 = arith.constant 12 : index
    %c1_99 = arith.constant 1 : index
    %212 = memref.load %arg2[%c12_98, %c1_99] : memref<32x4xf32, #tpu.memory_space<smem>>
    %213 = vector.broadcast %212 : f32 to vector<8x8xf32>
    %214 = arith.select %208, %213, %200 : vector<8x8xi1>, vector<8x8xf32>
    %c12_100 = arith.constant 12 : index
    %c2_101 = arith.constant 2 : index
    %215 = memref.load %arg2[%c12_100, %c2_101] : memref<32x4xf32, #tpu.memory_space<smem>>
    %216 = vector.broadcast %215 : f32 to vector<8x8xf32>
    %217 = arith.select %208, %216, %203 : vector<8x8xi1>, vector<8x8xf32>
    %c12_102 = arith.constant 12 : index
    %c3_103 = arith.constant 3 : index
    %218 = memref.load %arg2[%c12_102, %c3_103] : memref<32x4xf32, #tpu.memory_space<smem>>
    %219 = vector.broadcast %218 : f32 to vector<8x8xf32>
    %220 = arith.select %208, %219, %206 : vector<8x8xi1>, vector<8x8xf32>
    %c13_i32 = arith.constant 13 : i32
    %221 = vector.broadcast %c13_i32 : i32 to vector<8x8xi32>
    %222 = arith.cmpi eq, %34, %221 : vector<8x8xi32>
    %c13 = arith.constant 13 : index
    %c0_104 = arith.constant 0 : index
    %223 = memref.load %arg2[%c13, %c0_104] : memref<32x4xf32, #tpu.memory_space<smem>>
    %224 = vector.broadcast %223 : f32 to vector<8x8xf32>
    %225 = arith.select %222, %224, %211 : vector<8x8xi1>, vector<8x8xf32>
    %c13_105 = arith.constant 13 : index
    %c1_106 = arith.constant 1 : index
    %226 = memref.load %arg2[%c13_105, %c1_106] : memref<32x4xf32, #tpu.memory_space<smem>>
    %227 = vector.broadcast %226 : f32 to vector<8x8xf32>
    %228 = arith.select %222, %227, %214 : vector<8x8xi1>, vector<8x8xf32>
    %c13_107 = arith.constant 13 : index
    %c2_108 = arith.constant 2 : index
    %229 = memref.load %arg2[%c13_107, %c2_108] : memref<32x4xf32, #tpu.memory_space<smem>>
    %230 = vector.broadcast %229 : f32 to vector<8x8xf32>
    %231 = arith.select %222, %230, %217 : vector<8x8xi1>, vector<8x8xf32>
    %c13_109 = arith.constant 13 : index
    %c3_110 = arith.constant 3 : index
    %232 = memref.load %arg2[%c13_109, %c3_110] : memref<32x4xf32, #tpu.memory_space<smem>>
    %233 = vector.broadcast %232 : f32 to vector<8x8xf32>
    %234 = arith.select %222, %233, %220 : vector<8x8xi1>, vector<8x8xf32>
    %c14_i32 = arith.constant 14 : i32
    %235 = vector.broadcast %c14_i32 : i32 to vector<8x8xi32>
    %236 = arith.cmpi eq, %34, %235 : vector<8x8xi32>
    %c14 = arith.constant 14 : index
    %c0_111 = arith.constant 0 : index
    %237 = memref.load %arg2[%c14, %c0_111] : memref<32x4xf32, #tpu.memory_space<smem>>
    %238 = vector.broadcast %237 : f32 to vector<8x8xf32>
    %239 = arith.select %236, %238, %225 : vector<8x8xi1>, vector<8x8xf32>
    %c14_112 = arith.constant 14 : index
    %c1_113 = arith.constant 1 : index
    %240 = memref.load %arg2[%c14_112, %c1_113] : memref<32x4xf32, #tpu.memory_space<smem>>
    %241 = vector.broadcast %240 : f32 to vector<8x8xf32>
    %242 = arith.select %236, %241, %228 : vector<8x8xi1>, vector<8x8xf32>
    %c14_114 = arith.constant 14 : index
    %c2_115 = arith.constant 2 : index
    %243 = memref.load %arg2[%c14_114, %c2_115] : memref<32x4xf32, #tpu.memory_space<smem>>
    %244 = vector.broadcast %243 : f32 to vector<8x8xf32>
    %245 = arith.select %236, %244, %231 : vector<8x8xi1>, vector<8x8xf32>
    %c14_116 = arith.constant 14 : index
    %c3_117 = arith.constant 3 : index
    %246 = memref.load %arg2[%c14_116, %c3_117] : memref<32x4xf32, #tpu.memory_space<smem>>
    %247 = vector.broadcast %246 : f32 to vector<8x8xf32>
    %248 = arith.select %236, %247, %234 : vector<8x8xi1>, vector<8x8xf32>
    %c15_i32_118 = arith.constant 15 : i32
    %249 = vector.broadcast %c15_i32_118 : i32 to vector<8x8xi32>
    %250 = arith.cmpi eq, %34, %249 : vector<8x8xi32>
    %c15 = arith.constant 15 : index
    %c0_119 = arith.constant 0 : index
    %251 = memref.load %arg2[%c15, %c0_119] : memref<32x4xf32, #tpu.memory_space<smem>>
    %252 = vector.broadcast %251 : f32 to vector<8x8xf32>
    %253 = arith.select %250, %252, %239 : vector<8x8xi1>, vector<8x8xf32>
    %c15_120 = arith.constant 15 : index
    %c1_121 = arith.constant 1 : index
    %254 = memref.load %arg2[%c15_120, %c1_121] : memref<32x4xf32, #tpu.memory_space<smem>>
    %255 = vector.broadcast %254 : f32 to vector<8x8xf32>
    %256 = arith.select %250, %255, %242 : vector<8x8xi1>, vector<8x8xf32>
    %c15_122 = arith.constant 15 : index
    %c2_123 = arith.constant 2 : index
    %257 = memref.load %arg2[%c15_122, %c2_123] : memref<32x4xf32, #tpu.memory_space<smem>>
    %258 = vector.broadcast %257 : f32 to vector<8x8xf32>
    %259 = arith.select %250, %258, %245 : vector<8x8xi1>, vector<8x8xf32>
    %c15_124 = arith.constant 15 : index
    %c3_125 = arith.constant 3 : index
    %260 = memref.load %arg2[%c15_124, %c3_125] : memref<32x4xf32, #tpu.memory_space<smem>>
    %261 = vector.broadcast %260 : f32 to vector<8x8xf32>
    %262 = arith.select %250, %261, %248 : vector<8x8xi1>, vector<8x8xf32>
    %c16_i32_126 = arith.constant 16 : i32
    %263 = vector.broadcast %c16_i32_126 : i32 to vector<8x8xi32>
    %264 = arith.cmpi eq, %34, %263 : vector<8x8xi32>
    %c16 = arith.constant 16 : index
    %c0_127 = arith.constant 0 : index
    %265 = memref.load %arg2[%c16, %c0_127] : memref<32x4xf32, #tpu.memory_space<smem>>
    %266 = vector.broadcast %265 : f32 to vector<8x8xf32>
    %267 = arith.select %264, %266, %253 : vector<8x8xi1>, vector<8x8xf32>
    %c16_128 = arith.constant 16 : index
    %c1_129 = arith.constant 1 : index
    %268 = memref.load %arg2[%c16_128, %c1_129] : memref<32x4xf32, #tpu.memory_space<smem>>
    %269 = vector.broadcast %268 : f32 to vector<8x8xf32>
    %270 = arith.select %264, %269, %256 : vector<8x8xi1>, vector<8x8xf32>
    %c16_130 = arith.constant 16 : index
    %c2_131 = arith.constant 2 : index
    %271 = memref.load %arg2[%c16_130, %c2_131] : memref<32x4xf32, #tpu.memory_space<smem>>
    %272 = vector.broadcast %271 : f32 to vector<8x8xf32>
    %273 = arith.select %264, %272, %259 : vector<8x8xi1>, vector<8x8xf32>
    %c16_132 = arith.constant 16 : index
    %c3_133 = arith.constant 3 : index
    %274 = memref.load %arg2[%c16_132, %c3_133] : memref<32x4xf32, #tpu.memory_space<smem>>
    %275 = vector.broadcast %274 : f32 to vector<8x8xf32>
    %276 = arith.select %264, %275, %262 : vector<8x8xi1>, vector<8x8xf32>
    %c17_i32 = arith.constant 17 : i32
    %277 = vector.broadcast %c17_i32 : i32 to vector<8x8xi32>
    %278 = arith.cmpi eq, %34, %277 : vector<8x8xi32>
    %c17 = arith.constant 17 : index
    %c0_134 = arith.constant 0 : index
    %279 = memref.load %arg2[%c17, %c0_134] : memref<32x4xf32, #tpu.memory_space<smem>>
    %280 = vector.broadcast %279 : f32 to vector<8x8xf32>
    %281 = arith.select %278, %280, %267 : vector<8x8xi1>, vector<8x8xf32>
    %c17_135 = arith.constant 17 : index
    %c1_136 = arith.constant 1 : index
    %282 = memref.load %arg2[%c17_135, %c1_136] : memref<32x4xf32, #tpu.memory_space<smem>>
    %283 = vector.broadcast %282 : f32 to vector<8x8xf32>
    %284 = arith.select %278, %283, %270 : vector<8x8xi1>, vector<8x8xf32>
    %c17_137 = arith.constant 17 : index
    %c2_138 = arith.constant 2 : index
    %285 = memref.load %arg2[%c17_137, %c2_138] : memref<32x4xf32, #tpu.memory_space<smem>>
    %286 = vector.broadcast %285 : f32 to vector<8x8xf32>
    %287 = arith.select %278, %286, %273 : vector<8x8xi1>, vector<8x8xf32>
    %c17_139 = arith.constant 17 : index
    %c3_140 = arith.constant 3 : index
    %288 = memref.load %arg2[%c17_139, %c3_140] : memref<32x4xf32, #tpu.memory_space<smem>>
    %289 = vector.broadcast %288 : f32 to vector<8x8xf32>
    %290 = arith.select %278, %289, %276 : vector<8x8xi1>, vector<8x8xf32>
    %c18_i32 = arith.constant 18 : i32
    %291 = vector.broadcast %c18_i32 : i32 to vector<8x8xi32>
    %292 = arith.cmpi eq, %34, %291 : vector<8x8xi32>
    %c18 = arith.constant 18 : index
    %c0_141 = arith.constant 0 : index
    %293 = memref.load %arg2[%c18, %c0_141] : memref<32x4xf32, #tpu.memory_space<smem>>
    %294 = vector.broadcast %293 : f32 to vector<8x8xf32>
    %295 = arith.select %292, %294, %281 : vector<8x8xi1>, vector<8x8xf32>
    %c18_142 = arith.constant 18 : index
    %c1_143 = arith.constant 1 : index
    %296 = memref.load %arg2[%c18_142, %c1_143] : memref<32x4xf32, #tpu.memory_space<smem>>
    %297 = vector.broadcast %296 : f32 to vector<8x8xf32>
    %298 = arith.select %292, %297, %284 : vector<8x8xi1>, vector<8x8xf32>
    %c18_144 = arith.constant 18 : index
    %c2_145 = arith.constant 2 : index
    %299 = memref.load %arg2[%c18_144, %c2_145] : memref<32x4xf32, #tpu.memory_space<smem>>
    %300 = vector.broadcast %299 : f32 to vector<8x8xf32>
    %301 = arith.select %292, %300, %287 : vector<8x8xi1>, vector<8x8xf32>
    %c18_146 = arith.constant 18 : index
    %c3_147 = arith.constant 3 : index
    %302 = memref.load %arg2[%c18_146, %c3_147] : memref<32x4xf32, #tpu.memory_space<smem>>
    %303 = vector.broadcast %302 : f32 to vector<8x8xf32>
    %304 = arith.select %292, %303, %290 : vector<8x8xi1>, vector<8x8xf32>
    %c19_i32 = arith.constant 19 : i32
    %305 = vector.broadcast %c19_i32 : i32 to vector<8x8xi32>
    %306 = arith.cmpi eq, %34, %305 : vector<8x8xi32>
    %c19 = arith.constant 19 : index
    %c0_148 = arith.constant 0 : index
    %307 = memref.load %arg2[%c19, %c0_148] : memref<32x4xf32, #tpu.memory_space<smem>>
    %308 = vector.broadcast %307 : f32 to vector<8x8xf32>
    %309 = arith.select %306, %308, %295 : vector<8x8xi1>, vector<8x8xf32>
    %c19_149 = arith.constant 19 : index
    %c1_150 = arith.constant 1 : index
    %310 = memref.load %arg2[%c19_149, %c1_150] : memref<32x4xf32, #tpu.memory_space<smem>>
    %311 = vector.broadcast %310 : f32 to vector<8x8xf32>
    %312 = arith.select %306, %311, %298 : vector<8x8xi1>, vector<8x8xf32>
    %c19_151 = arith.constant 19 : index
    %c2_152 = arith.constant 2 : index
    %313 = memref.load %arg2[%c19_151, %c2_152] : memref<32x4xf32, #tpu.memory_space<smem>>
    %314 = vector.broadcast %313 : f32 to vector<8x8xf32>
    %315 = arith.select %306, %314, %301 : vector<8x8xi1>, vector<8x8xf32>
    %c19_153 = arith.constant 19 : index
    %c3_154 = arith.constant 3 : index
    %316 = memref.load %arg2[%c19_153, %c3_154] : memref<32x4xf32, #tpu.memory_space<smem>>
    %317 = vector.broadcast %316 : f32 to vector<8x8xf32>
    %318 = arith.select %306, %317, %304 : vector<8x8xi1>, vector<8x8xf32>
    %c20_i32 = arith.constant 20 : i32
    %319 = vector.broadcast %c20_i32 : i32 to vector<8x8xi32>
    %320 = arith.cmpi eq, %34, %319 : vector<8x8xi32>
    %c20 = arith.constant 20 : index
    %c0_155 = arith.constant 0 : index
    %321 = memref.load %arg2[%c20, %c0_155] : memref<32x4xf32, #tpu.memory_space<smem>>
    %322 = vector.broadcast %321 : f32 to vector<8x8xf32>
    %323 = arith.select %320, %322, %309 : vector<8x8xi1>, vector<8x8xf32>
    %c20_156 = arith.constant 20 : index
    %c1_157 = arith.constant 1 : index
    %324 = memref.load %arg2[%c20_156, %c1_157] : memref<32x4xf32, #tpu.memory_space<smem>>
    %325 = vector.broadcast %324 : f32 to vector<8x8xf32>
    %326 = arith.select %320, %325, %312 : vector<8x8xi1>, vector<8x8xf32>
    %c20_158 = arith.constant 20 : index
    %c2_159 = arith.constant 2 : index
    %327 = memref.load %arg2[%c20_158, %c2_159] : memref<32x4xf32, #tpu.memory_space<smem>>
    %328 = vector.broadcast %327 : f32 to vector<8x8xf32>
    %329 = arith.select %320, %328, %315 : vector<8x8xi1>, vector<8x8xf32>
    %c20_160 = arith.constant 20 : index
    %c3_161 = arith.constant 3 : index
    %330 = memref.load %arg2[%c20_160, %c3_161] : memref<32x4xf32, #tpu.memory_space<smem>>
    %331 = vector.broadcast %330 : f32 to vector<8x8xf32>
    %332 = arith.select %320, %331, %318 : vector<8x8xi1>, vector<8x8xf32>
    %c21_i32 = arith.constant 21 : i32
    %333 = vector.broadcast %c21_i32 : i32 to vector<8x8xi32>
    %334 = arith.cmpi eq, %34, %333 : vector<8x8xi32>
    %c21 = arith.constant 21 : index
    %c0_162 = arith.constant 0 : index
    %335 = memref.load %arg2[%c21, %c0_162] : memref<32x4xf32, #tpu.memory_space<smem>>
    %336 = vector.broadcast %335 : f32 to vector<8x8xf32>
    %337 = arith.select %334, %336, %323 : vector<8x8xi1>, vector<8x8xf32>
    %c21_163 = arith.constant 21 : index
    %c1_164 = arith.constant 1 : index
    %338 = memref.load %arg2[%c21_163, %c1_164] : memref<32x4xf32, #tpu.memory_space<smem>>
    %339 = vector.broadcast %338 : f32 to vector<8x8xf32>
    %340 = arith.select %334, %339, %326 : vector<8x8xi1>, vector<8x8xf32>
    %c21_165 = arith.constant 21 : index
    %c2_166 = arith.constant 2 : index
    %341 = memref.load %arg2[%c21_165, %c2_166] : memref<32x4xf32, #tpu.memory_space<smem>>
    %342 = vector.broadcast %341 : f32 to vector<8x8xf32>
    %343 = arith.select %334, %342, %329 : vector<8x8xi1>, vector<8x8xf32>
    %c21_167 = arith.constant 21 : index
    %c3_168 = arith.constant 3 : index
    %344 = memref.load %arg2[%c21_167, %c3_168] : memref<32x4xf32, #tpu.memory_space<smem>>
    %345 = vector.broadcast %344 : f32 to vector<8x8xf32>
    %346 = arith.select %334, %345, %332 : vector<8x8xi1>, vector<8x8xf32>
    %c22_i32 = arith.constant 22 : i32
    %347 = vector.broadcast %c22_i32 : i32 to vector<8x8xi32>
    %348 = arith.cmpi eq, %34, %347 : vector<8x8xi32>
    %c22 = arith.constant 22 : index
    %c0_169 = arith.constant 0 : index
    %349 = memref.load %arg2[%c22, %c0_169] : memref<32x4xf32, #tpu.memory_space<smem>>
    %350 = vector.broadcast %349 : f32 to vector<8x8xf32>
    %351 = arith.select %348, %350, %337 : vector<8x8xi1>, vector<8x8xf32>
    %c22_170 = arith.constant 22 : index
    %c1_171 = arith.constant 1 : index
    %352 = memref.load %arg2[%c22_170, %c1_171] : memref<32x4xf32, #tpu.memory_space<smem>>
    %353 = vector.broadcast %352 : f32 to vector<8x8xf32>
    %354 = arith.select %348, %353, %340 : vector<8x8xi1>, vector<8x8xf32>
    %c22_172 = arith.constant 22 : index
    %c2_173 = arith.constant 2 : index
    %355 = memref.load %arg2[%c22_172, %c2_173] : memref<32x4xf32, #tpu.memory_space<smem>>
    %356 = vector.broadcast %355 : f32 to vector<8x8xf32>
    %357 = arith.select %348, %356, %343 : vector<8x8xi1>, vector<8x8xf32>
    %c22_174 = arith.constant 22 : index
    %c3_175 = arith.constant 3 : index
    %358 = memref.load %arg2[%c22_174, %c3_175] : memref<32x4xf32, #tpu.memory_space<smem>>
    %359 = vector.broadcast %358 : f32 to vector<8x8xf32>
    %360 = arith.select %348, %359, %346 : vector<8x8xi1>, vector<8x8xf32>
    %c23_i32 = arith.constant 23 : i32
    %361 = vector.broadcast %c23_i32 : i32 to vector<8x8xi32>
    %362 = arith.cmpi eq, %34, %361 : vector<8x8xi32>
    %c23 = arith.constant 23 : index
    %c0_176 = arith.constant 0 : index
    %363 = memref.load %arg2[%c23, %c0_176] : memref<32x4xf32, #tpu.memory_space<smem>>
    %364 = vector.broadcast %363 : f32 to vector<8x8xf32>
    %365 = arith.select %362, %364, %351 : vector<8x8xi1>, vector<8x8xf32>
    %c23_177 = arith.constant 23 : index
    %c1_178 = arith.constant 1 : index
    %366 = memref.load %arg2[%c23_177, %c1_178] : memref<32x4xf32, #tpu.memory_space<smem>>
    %367 = vector.broadcast %366 : f32 to vector<8x8xf32>
    %368 = arith.select %362, %367, %354 : vector<8x8xi1>, vector<8x8xf32>
    %c23_179 = arith.constant 23 : index
    %c2_180 = arith.constant 2 : index
    %369 = memref.load %arg2[%c23_179, %c2_180] : memref<32x4xf32, #tpu.memory_space<smem>>
    %370 = vector.broadcast %369 : f32 to vector<8x8xf32>
    %371 = arith.select %362, %370, %357 : vector<8x8xi1>, vector<8x8xf32>
    %c23_181 = arith.constant 23 : index
    %c3_182 = arith.constant 3 : index
    %372 = memref.load %arg2[%c23_181, %c3_182] : memref<32x4xf32, #tpu.memory_space<smem>>
    %373 = vector.broadcast %372 : f32 to vector<8x8xf32>
    %374 = arith.select %362, %373, %360 : vector<8x8xi1>, vector<8x8xf32>
    %c24_i32 = arith.constant 24 : i32
    %375 = vector.broadcast %c24_i32 : i32 to vector<8x8xi32>
    %376 = arith.cmpi eq, %34, %375 : vector<8x8xi32>
    %c24 = arith.constant 24 : index
    %c0_183 = arith.constant 0 : index
    %377 = memref.load %arg2[%c24, %c0_183] : memref<32x4xf32, #tpu.memory_space<smem>>
    %378 = vector.broadcast %377 : f32 to vector<8x8xf32>
    %379 = arith.select %376, %378, %365 : vector<8x8xi1>, vector<8x8xf32>
    %c24_184 = arith.constant 24 : index
    %c1_185 = arith.constant 1 : index
    %380 = memref.load %arg2[%c24_184, %c1_185] : memref<32x4xf32, #tpu.memory_space<smem>>
    %381 = vector.broadcast %380 : f32 to vector<8x8xf32>
    %382 = arith.select %376, %381, %368 : vector<8x8xi1>, vector<8x8xf32>
    %c24_186 = arith.constant 24 : index
    %c2_187 = arith.constant 2 : index
    %383 = memref.load %arg2[%c24_186, %c2_187] : memref<32x4xf32, #tpu.memory_space<smem>>
    %384 = vector.broadcast %383 : f32 to vector<8x8xf32>
    %385 = arith.select %376, %384, %371 : vector<8x8xi1>, vector<8x8xf32>
    %c24_188 = arith.constant 24 : index
    %c3_189 = arith.constant 3 : index
    %386 = memref.load %arg2[%c24_188, %c3_189] : memref<32x4xf32, #tpu.memory_space<smem>>
    %387 = vector.broadcast %386 : f32 to vector<8x8xf32>
    %388 = arith.select %376, %387, %374 : vector<8x8xi1>, vector<8x8xf32>
    %c25_i32 = arith.constant 25 : i32
    %389 = vector.broadcast %c25_i32 : i32 to vector<8x8xi32>
    %390 = arith.cmpi eq, %34, %389 : vector<8x8xi32>
    %c25 = arith.constant 25 : index
    %c0_190 = arith.constant 0 : index
    %391 = memref.load %arg2[%c25, %c0_190] : memref<32x4xf32, #tpu.memory_space<smem>>
    %392 = vector.broadcast %391 : f32 to vector<8x8xf32>
    %393 = arith.select %390, %392, %379 : vector<8x8xi1>, vector<8x8xf32>
    %c25_191 = arith.constant 25 : index
    %c1_192 = arith.constant 1 : index
    %394 = memref.load %arg2[%c25_191, %c1_192] : memref<32x4xf32, #tpu.memory_space<smem>>
    %395 = vector.broadcast %394 : f32 to vector<8x8xf32>
    %396 = arith.select %390, %395, %382 : vector<8x8xi1>, vector<8x8xf32>
    %c25_193 = arith.constant 25 : index
    %c2_194 = arith.constant 2 : index
    %397 = memref.load %arg2[%c25_193, %c2_194] : memref<32x4xf32, #tpu.memory_space<smem>>
    %398 = vector.broadcast %397 : f32 to vector<8x8xf32>
    %399 = arith.select %390, %398, %385 : vector<8x8xi1>, vector<8x8xf32>
    %c25_195 = arith.constant 25 : index
    %c3_196 = arith.constant 3 : index
    %400 = memref.load %arg2[%c25_195, %c3_196] : memref<32x4xf32, #tpu.memory_space<smem>>
    %401 = vector.broadcast %400 : f32 to vector<8x8xf32>
    %402 = arith.select %390, %401, %388 : vector<8x8xi1>, vector<8x8xf32>
    %c26_i32 = arith.constant 26 : i32
    %403 = vector.broadcast %c26_i32 : i32 to vector<8x8xi32>
    %404 = arith.cmpi eq, %34, %403 : vector<8x8xi32>
    %c26 = arith.constant 26 : index
    %c0_197 = arith.constant 0 : index
    %405 = memref.load %arg2[%c26, %c0_197] : memref<32x4xf32, #tpu.memory_space<smem>>
    %406 = vector.broadcast %405 : f32 to vector<8x8xf32>
    %407 = arith.select %404, %406, %393 : vector<8x8xi1>, vector<8x8xf32>
    %c26_198 = arith.constant 26 : index
    %c1_199 = arith.constant 1 : index
    %408 = memref.load %arg2[%c26_198, %c1_199] : memref<32x4xf32, #tpu.memory_space<smem>>
    %409 = vector.broadcast %408 : f32 to vector<8x8xf32>
    %410 = arith.select %404, %409, %396 : vector<8x8xi1>, vector<8x8xf32>
    %c26_200 = arith.constant 26 : index
    %c2_201 = arith.constant 2 : index
    %411 = memref.load %arg2[%c26_200, %c2_201] : memref<32x4xf32, #tpu.memory_space<smem>>
    %412 = vector.broadcast %411 : f32 to vector<8x8xf32>
    %413 = arith.select %404, %412, %399 : vector<8x8xi1>, vector<8x8xf32>
    %c26_202 = arith.constant 26 : index
    %c3_203 = arith.constant 3 : index
    %414 = memref.load %arg2[%c26_202, %c3_203] : memref<32x4xf32, #tpu.memory_space<smem>>
    %415 = vector.broadcast %414 : f32 to vector<8x8xf32>
    %416 = arith.select %404, %415, %402 : vector<8x8xi1>, vector<8x8xf32>
    %c27_i32 = arith.constant 27 : i32
    %417 = vector.broadcast %c27_i32 : i32 to vector<8x8xi32>
    %418 = arith.cmpi eq, %34, %417 : vector<8x8xi32>
    %c27 = arith.constant 27 : index
    %c0_204 = arith.constant 0 : index
    %419 = memref.load %arg2[%c27, %c0_204] : memref<32x4xf32, #tpu.memory_space<smem>>
    %420 = vector.broadcast %419 : f32 to vector<8x8xf32>
    %421 = arith.select %418, %420, %407 : vector<8x8xi1>, vector<8x8xf32>
    %c27_205 = arith.constant 27 : index
    %c1_206 = arith.constant 1 : index
    %422 = memref.load %arg2[%c27_205, %c1_206] : memref<32x4xf32, #tpu.memory_space<smem>>
    %423 = vector.broadcast %422 : f32 to vector<8x8xf32>
    %424 = arith.select %418, %423, %410 : vector<8x8xi1>, vector<8x8xf32>
    %c27_207 = arith.constant 27 : index
    %c2_208 = arith.constant 2 : index
    %425 = memref.load %arg2[%c27_207, %c2_208] : memref<32x4xf32, #tpu.memory_space<smem>>
    %426 = vector.broadcast %425 : f32 to vector<8x8xf32>
    %427 = arith.select %418, %426, %413 : vector<8x8xi1>, vector<8x8xf32>
    %c27_209 = arith.constant 27 : index
    %c3_210 = arith.constant 3 : index
    %428 = memref.load %arg2[%c27_209, %c3_210] : memref<32x4xf32, #tpu.memory_space<smem>>
    %429 = vector.broadcast %428 : f32 to vector<8x8xf32>
    %430 = arith.select %418, %429, %416 : vector<8x8xi1>, vector<8x8xf32>
    %c28_i32 = arith.constant 28 : i32
    %431 = vector.broadcast %c28_i32 : i32 to vector<8x8xi32>
    %432 = arith.cmpi eq, %34, %431 : vector<8x8xi32>
    %c28 = arith.constant 28 : index
    %c0_211 = arith.constant 0 : index
    %433 = memref.load %arg2[%c28, %c0_211] : memref<32x4xf32, #tpu.memory_space<smem>>
    %434 = vector.broadcast %433 : f32 to vector<8x8xf32>
    %435 = arith.select %432, %434, %421 : vector<8x8xi1>, vector<8x8xf32>
    %c28_212 = arith.constant 28 : index
    %c1_213 = arith.constant 1 : index
    %436 = memref.load %arg2[%c28_212, %c1_213] : memref<32x4xf32, #tpu.memory_space<smem>>
    %437 = vector.broadcast %436 : f32 to vector<8x8xf32>
    %438 = arith.select %432, %437, %424 : vector<8x8xi1>, vector<8x8xf32>
    %c28_214 = arith.constant 28 : index
    %c2_215 = arith.constant 2 : index
    %439 = memref.load %arg2[%c28_214, %c2_215] : memref<32x4xf32, #tpu.memory_space<smem>>
    %440 = vector.broadcast %439 : f32 to vector<8x8xf32>
    %441 = arith.select %432, %440, %427 : vector<8x8xi1>, vector<8x8xf32>
    %c28_216 = arith.constant 28 : index
    %c3_217 = arith.constant 3 : index
    %442 = memref.load %arg2[%c28_216, %c3_217] : memref<32x4xf32, #tpu.memory_space<smem>>
    %443 = vector.broadcast %442 : f32 to vector<8x8xf32>
    %444 = arith.select %432, %443, %430 : vector<8x8xi1>, vector<8x8xf32>
    %c29_i32 = arith.constant 29 : i32
    %445 = vector.broadcast %c29_i32 : i32 to vector<8x8xi32>
    %446 = arith.cmpi eq, %34, %445 : vector<8x8xi32>
    %c29 = arith.constant 29 : index
    %c0_218 = arith.constant 0 : index
    %447 = memref.load %arg2[%c29, %c0_218] : memref<32x4xf32, #tpu.memory_space<smem>>
    %448 = vector.broadcast %447 : f32 to vector<8x8xf32>
    %449 = arith.select %446, %448, %435 : vector<8x8xi1>, vector<8x8xf32>
    %c29_219 = arith.constant 29 : index
    %c1_220 = arith.constant 1 : index
    %450 = memref.load %arg2[%c29_219, %c1_220] : memref<32x4xf32, #tpu.memory_space<smem>>
    %451 = vector.broadcast %450 : f32 to vector<8x8xf32>
    %452 = arith.select %446, %451, %438 : vector<8x8xi1>, vector<8x8xf32>
    %c29_221 = arith.constant 29 : index
    %c2_222 = arith.constant 2 : index
    %453 = memref.load %arg2[%c29_221, %c2_222] : memref<32x4xf32, #tpu.memory_space<smem>>
    %454 = vector.broadcast %453 : f32 to vector<8x8xf32>
    %455 = arith.select %446, %454, %441 : vector<8x8xi1>, vector<8x8xf32>
    %c29_223 = arith.constant 29 : index
    %c3_224 = arith.constant 3 : index
    %456 = memref.load %arg2[%c29_223, %c3_224] : memref<32x4xf32, #tpu.memory_space<smem>>
    %457 = vector.broadcast %456 : f32 to vector<8x8xf32>
    %458 = arith.select %446, %457, %444 : vector<8x8xi1>, vector<8x8xf32>
    %c30_i32 = arith.constant 30 : i32
    %459 = vector.broadcast %c30_i32 : i32 to vector<8x8xi32>
    %460 = arith.cmpi eq, %34, %459 : vector<8x8xi32>
    %c30 = arith.constant 30 : index
    %c0_225 = arith.constant 0 : index
    %461 = memref.load %arg2[%c30, %c0_225] : memref<32x4xf32, #tpu.memory_space<smem>>
    %462 = vector.broadcast %461 : f32 to vector<8x8xf32>
    %463 = arith.select %460, %462, %449 : vector<8x8xi1>, vector<8x8xf32>
    %c30_226 = arith.constant 30 : index
    %c1_227 = arith.constant 1 : index
    %464 = memref.load %arg2[%c30_226, %c1_227] : memref<32x4xf32, #tpu.memory_space<smem>>
    %465 = vector.broadcast %464 : f32 to vector<8x8xf32>
    %466 = arith.select %460, %465, %452 : vector<8x8xi1>, vector<8x8xf32>
    %c30_228 = arith.constant 30 : index
    %c2_229 = arith.constant 2 : index
    %467 = memref.load %arg2[%c30_228, %c2_229] : memref<32x4xf32, #tpu.memory_space<smem>>
    %468 = vector.broadcast %467 : f32 to vector<8x8xf32>
    %469 = arith.select %460, %468, %455 : vector<8x8xi1>, vector<8x8xf32>
    %c30_230 = arith.constant 30 : index
    %c3_231 = arith.constant 3 : index
    %470 = memref.load %arg2[%c30_230, %c3_231] : memref<32x4xf32, #tpu.memory_space<smem>>
    %471 = vector.broadcast %470 : f32 to vector<8x8xf32>
    %472 = arith.select %460, %471, %458 : vector<8x8xi1>, vector<8x8xf32>
    %c31_i32 = arith.constant 31 : i32
    %473 = vector.broadcast %c31_i32 : i32 to vector<8x8xi32>
    %474 = arith.cmpi eq, %34, %473 : vector<8x8xi32>
    %c31 = arith.constant 31 : index
    %c0_232 = arith.constant 0 : index
    %475 = memref.load %arg2[%c31, %c0_232] : memref<32x4xf32, #tpu.memory_space<smem>>
    %476 = vector.broadcast %475 : f32 to vector<8x8xf32>
    %477 = arith.select %474, %476, %463 : vector<8x8xi1>, vector<8x8xf32>
    %c31_233 = arith.constant 31 : index
    %c1_234 = arith.constant 1 : index
    %478 = memref.load %arg2[%c31_233, %c1_234] : memref<32x4xf32, #tpu.memory_space<smem>>
    %479 = vector.broadcast %478 : f32 to vector<8x8xf32>
    %480 = arith.select %474, %479, %466 : vector<8x8xi1>, vector<8x8xf32>
    %c31_235 = arith.constant 31 : index
    %c2_236 = arith.constant 2 : index
    %481 = memref.load %arg2[%c31_235, %c2_236] : memref<32x4xf32, #tpu.memory_space<smem>>
    %482 = vector.broadcast %481 : f32 to vector<8x8xf32>
    %483 = arith.select %474, %482, %469 : vector<8x8xi1>, vector<8x8xf32>
    %c31_237 = arith.constant 31 : index
    %c3_238 = arith.constant 3 : index
    %484 = memref.load %arg2[%c31_237, %c3_238] : memref<32x4xf32, #tpu.memory_space<smem>>
    %485 = vector.broadcast %484 : f32 to vector<8x8xf32>
    %486 = arith.select %474, %485, %472 : vector<8x8xi1>, vector<8x8xf32>
    %c0_239 = arith.constant 0 : index
    %c0_240 = arith.constant 0 : index
    %c0_241 = arith.constant 0 : index
    %487 = vector.load %arg3[%c0_239, %c0_240, %c0_241] : memref<4x8x8xf32, #tpu.memory_space<vmem>>, vector<1x8x8xf32>
    %488 = vector.shape_cast %487 : vector<1x8x8xf32> to vector<8x8xf32>
    %489 = vector.shape_cast %477 : vector<8x8xf32> to vector<1x8x8xf32>
    tpu.vector_store %arg3[%c0_239, %c0_240, %c0_241], %489 {strides = array<i32>} : memref<4x8x8xf32, #tpu.memory_space<vmem>>, vector<1x8x8xf32>,
    %c1_242 = arith.constant 1 : index
    %c0_243 = arith.constant 0 : index
    %c0_244 = arith.constant 0 : index
    %490 = vector.load %arg3[%c1_242, %c0_243, %c0_244] : memref<4x8x8xf32, #tpu.memory_space<vmem>>, vector<1x8x8xf32>
    %491 = vector.shape_cast %490 : vector<1x8x8xf32> to vector<8x8xf32>
    %492 = vector.shape_cast %480 : vector<8x8xf32> to vector<1x8x8xf32>
    tpu.vector_store %arg3[%c1_242, %c0_243, %c0_244], %492 {strides = array<i32>} : memref<4x8x8xf32, #tpu.memory_space<vmem>>, vector<1x8x8xf32>,
    %c2_245 = arith.constant 2 : index
    %c0_246 = arith.constant 0 : index
    %c0_247 = arith.constant 0 : index
    %493 = vector.load %arg3[%c2_245, %c0_246, %c0_247] : memref<4x8x8xf32, #tpu.memory_space<vmem>>, vector<1x8x8xf32>
    %494 = vector.shape_cast %493 : vector<1x8x8xf32> to vector<8x8xf32>
    %495 = vector.shape_cast %483 : vector<8x8xf32> to vector<1x8x8xf32>
    tpu.vector_store %arg3[%c2_245, %c0_246, %c0_247], %495 {strides = array<i32>} : memref<4x8x8xf32, #tpu.memory_space<vmem>>, vector<1x8x8xf32>,
    %c3_248 = arith.constant 3 : index
    %c0_249 = arith.constant 0 : index
    %c0_250 = arith.constant 0 : index
    %496 = vector.load %arg3[%c3_248, %c0_249, %c0_250] : memref<4x8x8xf32, #tpu.memory_space<vmem>>, vector<1x8x8xf32>
    %497 = vector.shape_cast %496 : vector<1x8x8xf32> to vector<8x8xf32>
    %498 = vector.shape_cast %486 : vector<8x8xf32> to vector<1x8x8xf32>
    tpu.vector_store %arg3[%c3_248, %c0_249, %c0_250], %498 {strides = array<i32>} : memref<4x8x8xf32, #tpu.memory_space<vmem>>, vector<1x8x8xf32>,
    return
  }
  func.func @transform_0(%arg0: i32, %arg1: i32) -> (i32, i32) {
    %c0_i32 = arith.constant 0 : i32
    %c0_i32_0 = arith.constant 0 : i32
    %c0_i32_1 = arith.constant 0 : i32
    return %c0_i32, %c0_i32_0 : i32, i32
  }
  func.func @transform_1(%arg0: i32, %arg1: i32) -> (i32, i32, i32) {
    %c0_i32 = arith.constant 0 : i32
    %c0_i32_0 = arith.constant 0 : i32
    return %c0_i32, %arg0, %arg1 : i32, i32, i32
  }
}

</mosaic_0001>

<llo_original>
// kernel: tpu_custom_call.1
$region0: #{tpu_custom_call.1}
  #allocation0 [shape = 'u32[]', space=smem, size = 0x4, offset = 0x4, fixed_abs, tag = 'smem constant byte address 0x4 - core index']
  #allocation1 [shape = 'u32[144,128]{1,0:T(1,128)}', space=vmem, size = 0x12000, scoped, tag = 'internal scratch']
  %s0 = inlined_call_operand.vmem [shape: f32[32,4], index: 0, kind: input, shape index: {}]
  %s1 = inlined_call_operand.hbm [shape: f32[4,8,8], index: 1, kind: output, shape index: {}]
  %s2 = sld [smem:[#allocation0]]
  $region18: #{tpu_custom_call.1} parent=0
    _
  %s4 = ssub.s32 1, %s2
  %s5 = scalar_select 0, %s4, %s2
  $region1: #{tpu_custom_call.1} parent=0
    #allocation2 [shape = 'u8[16384]{0}', space=smem, size = 0x4000, scoped, tag = 'input window, operand 0, single buffered']
    #allocation3 [shape = 's32[1]{0}', space=sflag, size = 0x4, scoped, tag = 'scoped memory for tpu_custom_call.1']
    #allocation4 [shape = 's32[1]{0}', space=sflag, size = 0x4, scoped, tag = 'scoped memory for tpu_custom_call.1']
    #allocation5 [shape = 'u8[16384]{0}', space=vmem, size = 0x4000, scoped, tag = 'output window, operand 0, single buffered']
    %6 = vsyncpa [#allocation4], 0
    %7 = vsyncpa [#allocation3], 0
    // Predicated region
    $region2: #{tpu_custom_call.1} parent=1 // pred_check
      _
    $region3: #{tpu_custom_call.1} parent=1 // pred_check_branch
      %9 = sbr.rel (0) target = $region5
    $region4: #{tpu_custom_call.1} parent=1 // pred_region
      %s11 = ssub.s32 512, 512
      %12 = vsyncadd [#allocation4], %s11
      %s13 = sshll.u32 %s0, 4
      %s14 = int_to_ptr.vmem [resolvable:$true] %s13
      %19 = dma.vmem_to_smem %s14, 512, [#allocation2], [#allocation4], 128, 128, 8
    $region5: #{tpu_custom_call.1} parent=1 // pred_fallthru
      _
    // Predicated region
    $region6: #{tpu_custom_call.1} parent=1 // pred_check
      _
    $region7: #{tpu_custom_call.1} parent=1 // pred_check_branch
      %21 = sbr.rel (0) target = $region9
    $region8: #{tpu_custom_call.1} parent=1 // pred_region
      %22 = dma.done [#allocation4], 512
    $region9: #{tpu_custom_call.1} parent=1 // pred_fallthru
      _
    %23 = sfence
    %s24 = smul.u32 0, 8
    %s25 = smul.u32 0, 8
    %v26 = vlaneseq
    %v27 = vshrl.u32 %v26, 7
    %v28 = vstv %s24
    %v29 = vadd.s32 %v28, %v27
    %v30 = vlaneseq
    %v31 = vand.u32 %v30, 127
    %v32 = vstv %s25
    %v33 = vadd.s32 %v32, %v31
    %v34 = vsub.s32 %v33, %v29
    %vm35 = vcmp.ge.s32.totalorder %v34, 1
    %v36 = vsel %vm35, 16, 0
    %vm37 = vcmp.lt.s32.totalorder %v34, 0
    %v38 = vsub.s32 0, %v34
    %v39 = vsel %vm37, %v38, %v34
    %vm40 = vcmp.lt.s32.totalorder %v39, 8
    %vm41 = vcmp.gt.s32.totalorder %v39, 1
    %v42 = vsel %vm41, %v39, 1
    %v43 = vcvt.s32.f32 %v42
    %v44 = vrcp.pop 8.0
    %v45 = vmul.f32 %v43, %v44
    %v46 = vlog2.pop %v45
    %v47 = vmul.f32 %v46, 0.6931472
    %v48 = vmul.f32 %v47, 0.36067376
    %v49 = vmul.f32 %v48, 8.0
    %v50 = vcvt.f32.s32.to.zero.pseudo %v49
    %v51 = vadd.s32 %v50, 8
    %vm52 = vcmp.lt.s32.totalorder %v51, 15
    %v53 = vsel %vm52, %v51, 15
    %v54 = vsel %vm40, %v39, %v53
    %v55 = vadd.s32 %v54, %v36
    %vm56 = vcmp.eq.s32.totalorder %v55, 0
    %s57 = sld [smem:[#allocation2]]
    %v58 = vstv %s57
    %v59 = vsel %vm56, %v58, 0.0
    %s60 = sld [smem:[#allocation2 + $0x1]]
    %v61 = vstv %s60
    %v62 = vsel %vm56, %v61, 0.0
    %s63 = sld [smem:[#allocation2 + $0x2]]
    %v64 = vstv %s63
    %v65 = vsel %vm56, %v64, 0.0
    %s66 = sld [smem:[#allocation2 + $0x3]]
    %v67 = vstv %s66
    %v68 = vsel %vm56, %v67, 0.0
    %vm69 = vcmp.eq.s32.totalorder %v55, 1
    %s70 = sld [smem:[#allocation2 + $0x80]]
    %v71 = vstv %s70
    %v72 = vsel %vm69, %v71, %v59
    %s73 = sld [smem:[#allocation2 + $0x81]]
    %v74 = vstv %s73
    %v75 = vsel %vm69, %v74, %v62
    %s76 = sld [smem:[#allocation2 + $0x82]]
    %v77 = vstv %s76
    %v78 = vsel %vm69, %v77, %v65
    %s79 = sld [smem:[#allocation2 + $0x83]]
    %v80 = vstv %s79
    %v81 = vsel %vm69, %v80, %v68
    %vm82 = vcmp.eq.s32.totalorder %v55, 2
    %s83 = sld [smem:[#allocation2 + $0x100]]
    %v84 = vstv %s83
    %v85 = vsel %vm82, %v84, %v72
    %s86 = sld [smem:[#allocation2 + $0x101]]
    %v87 = vstv %s86
    %v88 = vsel %vm82, %v87, %v75
    %s89 = sld [smem:[#allocation2 + $0x102]]
    %v90 = vstv %s89
    %v91 = vsel %vm82, %v90, %v78
    %s92 = sld [smem:[#allocation2 + $0x103]]
    %v93 = vstv %s92
    %v94 = vsel %vm82, %v93, %v81
    %vm95 = vcmp.eq.s32.totalorder %v55, 3
    %s96 = sld [smem:[#allocation2 + $0x180]]
    %v97 = vstv %s96
    %v98 = vsel %vm95, %v97, %v85
    %s99 = sld [smem:[#allocation2 + $0x181]]
    %v100 = vstv %s99
    %v101 = vsel %vm95, %v100, %v88
    %s102 = sld [smem:[#allocation2 + $0x182]]
    %v103 = vstv %s102
    %v104 = vsel %vm95, %v103, %v91
    %s105 = sld [smem:[#allocation2 + $0x183]]
    %v106 = vstv %s105
    %v107 = vsel %vm95, %v106, %v94
    %vm108 = vcmp.eq.s32.totalorder %v55, 4
    %s109 = sld [smem:[#allocation2 + $0x200]]
    %v110 = vstv %s109
    %v111 = vsel %vm108, %v110, %v98
    %s112 = sld [smem:[#allocation2 + $0x201]]
    %v113 = vstv %s112
    %v114 = vsel %vm108, %v113, %v101
    %s115 = sld [smem:[#allocation2 + $0x202]]
    %v116 = vstv %s115
    %v117 = vsel %vm108, %v116, %v104
    %s118 = sld [smem:[#allocation2 + $0x203]]
    %v119 = vstv %s118
    %v120 = vsel %vm108, %v119, %v107
    %vm121 = vcmp.eq.s32.totalorder %v55, 5
    %s122 = sld [smem:[#allocation2 + $0x280]]
    %v123 = vstv %s122
    %v124 = vsel %vm121, %v123, %v111
    %s125 = sld [smem:[#allocation2 + $0x281]]
    %v126 = vstv %s125
    %v127 = vsel %vm121, %v126, %v114
    %s128 = sld [smem:[#allocation2 + $0x282]]
    %v129 = vstv %s128
    %v130 = vsel %vm121, %v129, %v117
    %s131 = sld [smem:[#allocation2 + $0x283]]
    %v132 = vstv %s131
    %v133 = vsel %vm121, %v132, %v120
    %vm134 = vcmp.eq.s32.totalorder %v55, 6
    %s135 = sld [smem:[#allocation2 + $0x300]]
    %v136 = vstv %s135
    %v137 = vsel %vm134, %v136, %v124
    %s138 = sld [smem:[#allocation2 + $0x301]]
    %v139 = vstv %s138
    %v140 = vsel %vm134, %v139, %v127
    %s141 = sld [smem:[#allocation2 + $0x302]]
    %v142 = vstv %s141
    %v143 = vsel %vm134, %v142, %v130
    %s144 = sld [smem:[#allocation2 + $0x303]]
    %v145 = vstv %s144
    %v146 = vsel %vm134, %v145, %v133
    %vm147 = vcmp.eq.s32.totalorder %v55, 7
    %s148 = sld [smem:[#allocation2 + $0x380]]
    %v149 = vstv %s148
    %v150 = vsel %vm147, %v149, %v137
    %s151 = sld [smem:[#allocation2 + $0x381]]
    %v152 = vstv %s151
    %v153 = vsel %vm147, %v152, %v140
    %s154 = sld [smem:[#allocation2 + $0x382]]
    %v155 = vstv %s154
    %v156 = vsel %vm147, %v155, %v143
    %s157 = sld [smem:[#allocation2 + $0x383]]
    %v158 = vstv %s157
    %v159 = vsel %vm147, %v158, %v146
    %vm160 = vcmp.eq.s32.totalorder %v55, 8
    %s161 = sld [smem:[#allocation2 + $0x400]]
    %v162 = vstv %s161
    %v163 = vsel %vm160, %v162, %v150
    %s164 = sld [smem:[#allocation2 + $0x401]]
    %v165 = vstv %s164
    %v166 = vsel %vm160, %v165, %v153
    %s167 = sld [smem:[#allocation2 + $0x402]]
    %v168 = vstv %s167
    %v169 = vsel %vm160, %v168, %v156
    %s170 = sld [smem:[#allocation2 + $0x403]]
    %v171 = vstv %s170
    %v172 = vsel %vm160, %v171, %v159
    %vm173 = vcmp.eq.s32.totalorder %v55, 9
    %s174 = sld [smem:[#allocation2 + $0x480]]
    %v175 = vstv %s174
    %v176 = vsel %vm173, %v175, %v163
    %s177 = sld [smem:[#allocation2 + $0x481]]
    %v178 = vstv %s177
    %v179 = vsel %vm173, %v178, %v166
    %s180 = sld [smem:[#allocation2 + $0x482]]
    %v181 = vstv %s180
    %v182 = vsel %vm173, %v181, %v169
    %s183 = sld [smem:[#allocation2 + $0x483]]
    %v184 = vstv %s183
    %v185 = vsel %vm173, %v184, %v172
    %vm186 = vcmp.eq.s32.totalorder %v55, 10
    %s187 = sld [smem:[#allocation2 + $0x500]]
    %v188 = vstv %s187
    %v189 = vsel %vm186, %v188, %v176
    %s190 = sld [smem:[#allocation2 + $0x501]]
    %v191 = vstv %s190
    %v192 = vsel %vm186, %v191, %v179
    %s193 = sld [smem:[#allocation2 + $0x502]]
    %v194 = vstv %s193
    %v195 = vsel %vm186, %v194, %v182
    %s196 = sld [smem:[#allocation2 + $0x503]]
    %v197 = vstv %s196
    %v198 = vsel %vm186, %v197, %v185
    %vm199 = vcmp.eq.s32.totalorder %v55, 11
    %s200 = sld [smem:[#allocation2 + $0x580]]
    %v201 = vstv %s200
    %v202 = vsel %vm199, %v201, %v189
    %s203 = sld [smem:[#allocation2 + $0x581]]
    %v204 = vstv %s203
    %v205 = vsel %vm199, %v204, %v192
    %s206 = sld [smem:[#allocation2 + $0x582]]
    %v207 = vstv %s206
    %v208 = vsel %vm199, %v207, %v195
    %s209 = sld [smem:[#allocation2 + $0x583]]
    %v210 = vstv %s209
    %v211 = vsel %vm199, %v210, %v198
    %vm212 = vcmp.eq.s32.totalorder %v55, 12
    %s213 = sld [smem:[#allocation2 + $0x600]]
    %v214 = vstv %s213
    %v215 = vsel %vm212, %v214, %v202
    %s216 = sld [smem:[#allocation2 + $0x601]]
    %v217 = vstv %s216
    %v218 = vsel %vm212, %v217, %v205
    %s219 = sld [smem:[#allocation2 + $0x602]]
    %v220 = vstv %s219
    %v221 = vsel %vm212, %v220, %v208
    %s222 = sld [smem:[#allocation2 + $0x603]]
    %v223 = vstv %s222
    %v224 = vsel %vm212, %v223, %v211
    %vm225 = vcmp.eq.s32.totalorder %v55, 13
    %s226 = sld [smem:[#allocation2 + $0x680]]
    %v227 = vstv %s226
    %v228 = vsel %vm225, %v227, %v215
    %s229 = sld [smem:[#allocation2 + $0x681]]
    %v230 = vstv %s229
    %v231 = vsel %vm225, %v230, %v218
    %s232 = sld [smem:[#allocation2 + $0x682]]
    %v233 = vstv %s232
    %v234 = vsel %vm225, %v233, %v221
    %s235 = sld [smem:[#allocation2 + $0x683]]
    %v236 = vstv %s235
    %v237 = vsel %vm225, %v236, %v224
    %vm238 = vcmp.eq.s32.totalorder %v55, 14
    %s239 = sld [smem:[#allocation2 + $0x700]]
    %v240 = vstv %s239
    %v241 = vsel %vm238, %v240, %v228
    %s242 = sld [smem:[#allocation2 + $0x701]]
    %v243 = vstv %s242
    %v244 = vsel %vm238, %v243, %v231
    %s245 = sld [smem:[#allocation2 + $0x702]]
    %v246 = vstv %s245
    %v247 = vsel %vm238, %v246, %v234
    %s248 = sld [smem:[#allocation2 + $0x703]]
    %v249 = vstv %s248
    %v250 = vsel %vm238, %v249, %v237
    %vm251 = vcmp.eq.s32.totalorder %v55, 15
    %s252 = sld [smem:[#allocation2 + $0x780]]
    %v253 = vstv %s252
    %v254 = vsel %vm251, %v253, %v241
    %s255 = sld [smem:[#allocation2 + $0x781]]
    %v256 = vstv %s255
    %v257 = vsel %vm251, %v256, %v244
    %s258 = sld [smem:[#allocation2 + $0x782]]
    %v259 = vstv %s258
    %v260 = vsel %vm251, %v259, %v247
    %s261 = sld [smem:[#allocation2 + $0x783]]
    %v262 = vstv %s261
    %v263 = vsel %vm251, %v262, %v250
    %vm264 = vcmp.eq.s32.totalorder %v55, 16
    %s265 = sld [smem:[#allocation2 + $0x800]]
    %v266 = vstv %s265
    %v267 = vsel %vm264, %v266, %v254
    %s268 = sld [smem:[#allocation2 + $0x801]]
    %v269 = vstv %s268
    %v270 = vsel %vm264, %v269, %v257
    %s271 = sld [smem:[#allocation2 + $0x802]]
    %v272 = vstv %s271
    %v273 = vsel %vm264, %v272, %v260
    %s274 = sld [smem:[#allocation2 + $0x803]]
    %v275 = vstv %s274
    %v276 = vsel %vm264, %v275, %v263
    %vm277 = vcmp.eq.s32.totalorder %v55, 17
    %s278 = sld [smem:[#allocation2 + $0x880]]
    %v279 = vstv %s278
    %v280 = vsel %vm277, %v279, %v267
    %s281 = sld [smem:[#allocation2 + $0x881]]
    %v282 = vstv %s281
    %v283 = vsel %vm277, %v282, %v270
    %s284 = sld [smem:[#allocation2 + $0x882]]
    %v285 = vstv %s284
    %v286 = vsel %vm277, %v285, %v273
    %s287 = sld [smem:[#allocation2 + $0x883]]
    %v288 = vstv %s287
    %v289 = vsel %vm277, %v288, %v276
    %vm290 = vcmp.eq.s32.totalorder %v55, 18
    %s291 = sld [smem:[#allocation2 + $0x900]]
    %v292 = vstv %s291
    %v293 = vsel %vm290, %v292, %v280
    %s294 = sld [smem:[#allocation2 + $0x901]]
    %v295 = vstv %s294
    %v296 = vsel %vm290, %v295, %v283
    %s297 = sld [smem:[#allocation2 + $0x902]]
    %v298 = vstv %s297
    %v299 = vsel %vm290, %v298, %v286
    %s300 = sld [smem:[#allocation2 + $0x903]]
    %v301 = vstv %s300
    %v302 = vsel %vm290, %v301, %v289
    %vm303 = vcmp.eq.s32.totalorder %v55, 19
    %s304 = sld [smem:[#allocation2 + $0x980]]
    %v305 = vstv %s304
    %v306 = vsel %vm303, %v305, %v293
    %s307 = sld [smem:[#allocation2 + $0x981]]
    %v308 = vstv %s307
    %v309 = vsel %vm303, %v308, %v296
    %s310 = sld [smem:[#allocation2 + $0x982]]
    %v311 = vstv %s310
    %v312 = vsel %vm303, %v311, %v299
    %s313 = sld [smem:[#allocation2 + $0x983]]
    %v314 = vstv %s313
    %v315 = vsel %vm303, %v314, %v302
    %vm316 = vcmp.eq.s32.totalorder %v55, 20
    %s317 = sld [smem:[#allocation2 + $0xa00]]
    %v318 = vstv %s317
    %v319 = vsel %vm316, %v318, %v306
    %s320 = sld [smem:[#allocation2 + $0xa01]]
    %v321 = vstv %s320
    %v322 = vsel %vm316, %v321, %v309
    %s323 = sld [smem:[#allocation2 + $0xa02]]
    %v324 = vstv %s323
    %v325 = vsel %vm316, %v324, %v312
    %s326 = sld [smem:[#allocation2 + $0xa03]]
    %v327 = vstv %s326
    %v328 = vsel %vm316, %v327, %v315
    %vm329 = vcmp.eq.s32.totalorder %v55, 21
    %s330 = sld [smem:[#allocation2 + $0xa80]]
    %v331 = vstv %s330
    %v332 = vsel %vm329, %v331, %v319
    %s333 = sld [smem:[#allocation2 + $0xa81]]
    %v334 = vstv %s333
    %v335 = vsel %vm329, %v334, %v322
    %s336 = sld [smem:[#allocation2 + $0xa82]]
    %v337 = vstv %s336
    %v338 = vsel %vm329, %v337, %v325
    %s339 = sld [smem:[#allocation2 + $0xa83]]
    %v340 = vstv %s339
    %v341 = vsel %vm329, %v340, %v328
    %vm342 = vcmp.eq.s32.totalorder %v55, 22
    %s343 = sld [smem:[#allocation2 + $0xb00]]
    %v344 = vstv %s343
    %v345 = vsel %vm342, %v344, %v332
    %s346 = sld [smem:[#allocation2 + $0xb01]]
    %v347 = vstv %s346
    %v348 = vsel %vm342, %v347, %v335
    %s349 = sld [smem:[#allocation2 + $0xb02]]
    %v350 = vstv %s349
    %v351 = vsel %vm342, %v350, %v338
    %s352 = sld [smem:[#allocation2 + $0xb03]]
    %v353 = vstv %s352
    %v354 = vsel %vm342, %v353, %v341
    %vm355 = vcmp.eq.s32.totalorder %v55, 23
    %s356 = sld [smem:[#allocation2 + $0xb80]]
    %v357 = vstv %s356
    %v358 = vsel %vm355, %v357, %v345
    %s359 = sld [smem:[#allocation2 + $0xb81]]
    %v360 = vstv %s359
    %v361 = vsel %vm355, %v360, %v348
    %s362 = sld [smem:[#allocation2 + $0xb82]]
    %v363 = vstv %s362
    %v364 = vsel %vm355, %v363, %v351
    %s365 = sld [smem:[#allocation2 + $0xb83]]
    %v366 = vstv %s365
    %v367 = vsel %vm355, %v366, %v354
    %vm368 = vcmp.eq.s32.totalorder %v55, 24
    %s369 = sld [smem:[#allocation2 + $0xc00]]
    %v370 = vstv %s369
    %v371 = vsel %vm368, %v370, %v358
    %s372 = sld [smem:[#allocation2 + $0xc01]]
    %v373 = vstv %s372
    %v374 = vsel %vm368, %v373, %v361
    %s375 = sld [smem:[#allocation2 + $0xc02]]
    %v376 = vstv %s375
    %v377 = vsel %vm368, %v376, %v364
    %s378 = sld [smem:[#allocation2 + $0xc03]]
    %v379 = vstv %s378
    %v380 = vsel %vm368, %v379, %v367
    %vm381 = vcmp.eq.s32.totalorder %v55, 25
    %s382 = sld [smem:[#allocation2 + $0xc80]]
    %v383 = vstv %s382
    %v384 = vsel %vm381, %v383, %v371
    %s385 = sld [smem:[#allocation2 + $0xc81]]
    %v386 = vstv %s385
    %v387 = vsel %vm381, %v386, %v374
    %s388 = sld [smem:[#allocation2 + $0xc82]]
    %v389 = vstv %s388
    %v390 = vsel %vm381, %v389, %v377
    %s391 = sld [smem:[#allocation2 + $0xc83]]
    %v392 = vstv %s391
    %v393 = vsel %vm381, %v392, %v380
    %vm394 = vcmp.eq.s32.totalorder %v55, 26
    %s395 = sld [smem:[#allocation2 + $0xd00]]
    %v396 = vstv %s395
    %v397 = vsel %vm394, %v396, %v384
    %s398 = sld [smem:[#allocation2 + $0xd01]]
    %v399 = vstv %s398
    %v400 = vsel %vm394, %v399, %v387
    %s401 = sld [smem:[#allocation2 + $0xd02]]
    %v402 = vstv %s401
    %v403 = vsel %vm394, %v402, %v390
    %s404 = sld [smem:[#allocation2 + $0xd03]]
    %v405 = vstv %s404
    %v406 = vsel %vm394, %v405, %v393
    %vm407 = vcmp.eq.s32.totalorder %v55, 27
    %s408 = sld [smem:[#allocation2 + $0xd80]]
    %v409 = vstv %s408
    %v410 = vsel %vm407, %v409, %v397
    %s411 = sld [smem:[#allocation2 + $0xd81]]
    %v412 = vstv %s411
    %v413 = vsel %vm407, %v412, %v400
    %s414 = sld [smem:[#allocation2 + $0xd82]]
    %v415 = vstv %s414
    %v416 = vsel %vm407, %v415, %v403
    %s417 = sld [smem:[#allocation2 + $0xd83]]
    %v418 = vstv %s417
    %v419 = vsel %vm407, %v418, %v406
    %vm420 = vcmp.eq.s32.totalorder %v55, 28
    %s421 = sld [smem:[#allocation2 + $0xe00]]
    %v422 = vstv %s421
    %v423 = vsel %vm420, %v422, %v410
    %s424 = sld [smem:[#allocation2 + $0xe01]]
    %v425 = vstv %s424
    %v426 = vsel %vm420, %v425, %v413
    %s427 = sld [smem:[#allocation2 + $0xe02]]
    %v428 = vstv %s427
    %v429 = vsel %vm420, %v428, %v416
    %s430 = sld [smem:[#allocation2 + $0xe03]]
    %v431 = vstv %s430
    %v432 = vsel %vm420, %v431, %v419
    %vm433 = vcmp.eq.s32.totalorder %v55, 29
    %s434 = sld [smem:[#allocation2 + $0xe80]]
    %v435 = vstv %s434
    %v436 = vsel %vm433, %v435, %v423
    %s437 = sld [smem:[#allocation2 + $0xe81]]
    %v438 = vstv %s437
    %v439 = vsel %vm433, %v438, %v426
    %s440 = sld [smem:[#allocation2 + $0xe82]]
    %v441 = vstv %s440
    %v442 = vsel %vm433, %v441, %v429
    %s443 = sld [smem:[#allocation2 + $0xe83]]
    %v444 = vstv %s443
    %v445 = vsel %vm433, %v444, %v432
    %vm446 = vcmp.eq.s32.totalorder %v55, 30
    %s447 = sld [smem:[#allocation2 + $0xf00]]
    %v448 = vstv %s447
    %v449 = vsel %vm446, %v448, %v436
    %s450 = sld [smem:[#allocation2 + $0xf01]]
    %v451 = vstv %s450
    %v452 = vsel %vm446, %v451, %v439
    %s453 = sld [smem:[#allocation2 + $0xf02]]
    %v454 = vstv %s453
    %v455 = vsel %vm446, %v454, %v442
    %s456 = sld [smem:[#allocation2 + $0xf03]]
    %v457 = vstv %s456
    %v458 = vsel %vm446, %v457, %v445
    %vm459 = vcmp.eq.s32.totalorder %v55, 31
    %s460 = sld [smem:[#allocation2 + $0xf80]]
    %v461 = vstv %s460
    %v462 = vsel %vm459, %v461, %v449
    %s463 = sld [smem:[#allocation2 + $0xf81]]
    %v464 = vstv %s463
    %v465 = vsel %vm459, %v464, %v452
    %s466 = sld [smem:[#allocation2 + $0xf82]]
    %v467 = vstv %s466
    %v468 = vsel %vm459, %v467, %v455
    %s469 = sld [smem:[#allocation2 + $0xf83]]
    %v470 = vstv %s469
    %v471 = vsel %vm459, %v470, %v458
    %vm472 = vcmask 64512
    %473 = vst.msk [vmem:[#allocation5] sm:$0xff] %vm472, %v462
    %s474 = scalar_lea.vmem [#allocation5], 8
    %475 = vst.msk [vmem:[%s474] sm:$0xff] %vm472, %v465
    %s476 = scalar_lea.vmem [#allocation5], 16
    %477 = vst.msk [vmem:[%s476] sm:$0xff] %vm472, %v468
    %s478 = scalar_lea.vmem [#allocation5], 24
    %479 = vst.msk [vmem:[%s478] sm:$0xff] %vm472, %v471
    // Predicated region
    $region10: #{tpu_custom_call.1} parent=1 // pred_check
      _
    $region11: #{tpu_custom_call.1} parent=1 // pred_check_branch
      %481 = sbr.rel (0) target = $region13
    $region12: #{tpu_custom_call.1} parent=1 // pred_region
      %s483 = ssub.s32 512, 512
      %484 = vsyncadd [#allocation3], %s483
      %s485 = sshll.u32 [#allocation5], 4
      %s486 = int_to_ptr.vmem [resolvable:$true] %s485
      %491 = dma.vmem_to_hbm [thread:$0]  %s486, 512, %s1, [#allocation3], 128, 128, 8
    $region13: #{tpu_custom_call.1} parent=1 // pred_fallthru
      _
    // Predicated region
    $region14: #{tpu_custom_call.1} parent=1 // pred_check
      _
    $region15: #{tpu_custom_call.1} parent=1 // pred_check_branch
      %493 = sbr.rel (0) target = $region17
    $region16: #{tpu_custom_call.1} parent=1 // pred_region
      %494 = dma.done [#allocation3], 512
    $region17: #{tpu_custom_call.1} parent=1 // pred_fallthru
      _
    %495 = vsyncpa [#allocation3], 1
    %496 = vsyncpa [#allocation4], 1

</llo_original>
